<compile_context>
chip_gen: v6e
topology: v6e:2x2x1
jax: 0.10.0
libtpu: 0.0.40
codegen_flags: <defaults>
</compile_context>

<pallas_src>
import math

import jax
import jax.numpy as jnp
from jax.experimental import pallas as pl
from jax.experimental.pallas import tpu as pltpu


# ~4 MiB of f32 per input tile (HBM-roofline sweet spot per measured data).
_TARGET_ELEMS = 1024 * 1024


def _static_float(v):
    """float(v) if v is concrete at trace time, else None (traced)."""
    try:
        return float(jnp.asarray(v).reshape(-1)[0])
    except (jax.errors.ConcretizationTypeError, TypeError):
        return None


def _int_pow(x, n):
    """x**n for a trace-time Python int n >= 1 (VPU multiplies only)."""
    result = None
    base = x
    while n > 0:
        if n & 1:
            result = base if result is None else result * base
        n >>= 1
        if n:
            base = base * base
    return result


def _pow(xc, pv):
    """xc**pv with xc >= eps > 0; pv is a Python int/float or a traced scalar."""
    if isinstance(pv, int):
        return _int_pow(xc, pv)            # VPU-only, no transcendentals
    return jnp.exp(pv * jnp.log(xc))       # generic pow via EUP


def _make_single_chunk_kernel(eps, hw, pv, inv_p):
    """Whole spatial extent in one tile: elementwise pow + lane reduce + root."""
    log_hw = math.log(hw)

    def compute(p_val, p_inv, x_ref, o_ref):
        xc = jnp.maximum(x_ref[...].astype(jnp.float32), eps)
        xp = _pow(xc, p_val)
        s = jnp.sum(xp, axis=-1, keepdims=True)
        # (sum / hw) ** (1/p) == exp((log(sum) - log(hw)) / p)
        o_ref[...] = jnp.exp((jnp.log(s) - log_hw) * p_inv).astype(o_ref.dtype)

    if pv is not None:       # p baked in at trace time; no SMEM operand
        def kernel(x_ref, o_ref):
            compute(pv, inv_p, x_ref, o_ref)
    else:                    # learnable / traced p: scalar in SMEM
        def kernel(p_ref, x_ref, o_ref):
            p = p_ref[0]
            compute(p, 1.0 / p, x_ref, o_ref)

    return kernel


def _make_chunked_kernel(eps, hw, lane_block, num_chunks, pv, inv_p):
    """Chunked spatial reduction with a lane-dense f32 accumulator."""
    log_hw = math.log(hw)
    tail = hw - (num_chunks - 1) * lane_block   # valid lanes in the last chunk
    needs_mask = tail != lane_block

    def compute(p_val, p_inv, x_ref, o_ref, acc_ref):
        k = pl.program_id(1)

        @pl.when(k == 0)
        def _():
            acc_ref[...] = jnp.zeros_like(acc_ref)

        xc = jnp.maximum(x_ref[...].astype(jnp.float32), eps)
        xp = _pow(xc, p_val)

        if needs_mask:
            # Fully-valid chunks take the cheap lane-dense VPU-add path; only
            # the ragged final chunk pays for the iota/compare/select.
            @pl.when(k < num_chunks - 1)
            def _():
                acc_ref[...] += xp

            @pl.when(k == num_chunks - 1)
            def _():
                lane = jax.lax.broadcasted_iota(jnp.int32, xp.shape, 1)
                acc_ref[...] += jnp.where(lane < tail, xp, 0.0)
        else:
            acc_ref[...] += xp

        @pl.when(k == num_chunks - 1)
        def _():
            # Single cross-lane (XLU) reduce + log-space root per row block.
            s = jnp.sum(acc_ref[...], axis=-1, keepdims=True)
            o_ref[...] = jnp.exp((jnp.log(s) - log_hw) * p_inv).astype(o_ref.dtype)

    if pv is not None:
        def kernel(x_ref, o_ref, acc_ref):
            compute(pv, inv_p, x_ref, o_ref, acc_ref)
    else:
        def kernel(p_ref, x_ref, o_ref, acc_ref):
            p = p_ref[0]
            compute(p, 1.0 / p, x_ref, o_ref, acc_ref)

    return kernel


def _choose_tiling(rows, hw):
    """Returns (row_block, lane_block, num_chunks)."""
    min_rows = min(rows, 8)

    # --- Preferred: one full-extent spatial chunk (no mask, no accumulator,
    # --- no reduction grid axis). ---
    if min_rows * hw <= _TARGET_ELEMS:
        lane_block = hw
        if rows <= 8:
            return rows, lane_block, 1          # full-extent row block
        # Fill the element budget (multiple of 8) with an EVEN number of
        # near-equal row blocks so both v7x TensorCores get balanced work.
        max_rb = max(8, (_TARGET_ELEMS // hw) // 8 * 8)
        nb = pl.cdiv(rows, max_rb)
        if rows >= 16:
            nb = 2 * ((nb + 1) // 2)
        row_block = ((pl.cdiv(rows, nb) + 7) // 8) * 8
        if row_block >= rows:
            row_block = rows                    # full extent (always legal)
        return row_block, lane_block, 1

    # --- Fallback: very large feature maps (hw > ~128K f32 elements per 8
    # --- rows).  Minimal row block, lane chunks near the budget; prefer a
    # --- chunk width that divides hw so the ragged-tail mask disappears. ---
    row_block = min_rows
    max_lanes = max(128, (_TARGET_ELEMS // row_block) // 128 * 128)
    lane_block = min(max_lanes, (hw // 128) * 128)
    for cand in range(lane_block, max(lane_block // 2, 128) - 1, -128):
        if hw % cand == 0:
            lane_block = cand
            break
    num_chunks = pl.cdiv(hw, lane_block)
    return row_block, lane_block, num_chunks


def gem_pallas(x, p, eps=1e-6):
    """Generalized mean pooling.

    Args:
      x:   [N, C, H, W] array (any float dtype).
      p:   [1] learnable exponent parameter.
      eps: clamp floor.

    Returns:
      [N, C, 1, 1] array, same dtype as x.
    """
    N, C, H, W = x.shape
    rows = N * C
    hw = H * W
    x2d = x.reshape(rows, hw)
    itemsize = x.dtype.itemsize

    row_block, lane_block, num_chunks = _choose_tiling(rows, hw)
    num_row_blocks = pl.cdiv(rows, row_block)

    # Specialize on a trace-time-known p: the common integer p (p=3) needs no
    # per-element transcendentals at all (pure VPU, HBM-bound everywhere).
    p_static = _static_float(p)
    if p_static is not None:
        p_int = int(round(p_static))
        pv = p_int if (abs(p_static - p_int) < 1e-12 and 1 <= p_int <= 16) else p_static
        inv_p = 1.0 / p_static
        p_is_int = isinstance(pv, int)
    else:
        pv, inv_p, p_is_int = None, None, False

    # VMEM budget from the f32-widened working set: double-buffered input
    # tile + f32 temporaries (+ lane-dense accumulator when chunked) +
    # headroom.  Capped at 32 MiB (v7x default scoped VMEM; 64 MiB physical).
    tile_in = row_block * lane_block * itemsize
    tile_f32 = row_block * lane_block * 4
    acc_bytes = tile_f32 if num_chunks > 1 else 0
    vmem_limit = int(min(32 * 1024 * 1024,
                         max(8 * 1024 * 1024,
                             2 * tile_in + 4 * tile_f32 + acc_bytes
                             + 2 * 1024 * 1024)))

    cost = pl.CostEstimate(
        flops=(4 if p_is_int else 3) * rows * hw,
        transcendentals=(0 if p_is_int else 2 * rows * hw) + 2 * rows,
        bytes_accessed=rows * hw * itemsize + rows * itemsize + 4,
    )

    if num_chunks == 1:
        grid = (num_row_blocks,)
        x_spec = pl.BlockSpec((row_block, lane_block), lambda i: (i, 0))
        out_spec = pl.BlockSpec((row_block, 1), lambda i: (i, 0))
        scratch = []
        semantics = ("parallel",)
        kernel = _make_single_chunk_kernel(eps, hw, pv, inv_p)
    else:
        grid = (num_row_blocks, num_chunks)
        x_spec = pl.BlockSpec((row_block, lane_block), lambda i, k: (i, k))
        out_spec = pl.BlockSpec((row_block, 1), lambda i, k: (i, 0))
        scratch = [pltpu.VMEM((row_block, lane_block), jnp.float32)]
        semantics = ("parallel", "arbitrary")
        kernel = _make_chunked_kernel(eps, hw, lane_block, num_chunks, pv, inv_p)

    if pv is None:
        in_specs = [pl.BlockSpec(memory_space=pltpu.SMEM), x_spec]
        operands = (p.astype(jnp.float32).reshape(-1), x2d)
    else:
        in_specs = [x_spec]
        operands = (x2d,)

    out2d = pl.pallas_call(
        kernel,
        out_shape=jax.ShapeDtypeStruct((rows, 1), x.dtype),
        grid=grid,
        in_specs=in_specs,
        out_specs=out_spec,
        scratch_shapes=scratch,
        compiler_params=pltpu.CompilerParams(
            dimension_semantics=semantics,
            vmem_limit_bytes=vmem_limit),
        cost_estimate=cost,
    )(*operands)

    return out2d.reshape(N, C, 1, 1)


def gem_reference(x, p, eps=1e-6):
    """Pure-JAX reference matching the PyTorch gem() semantics."""
    xc = jnp.maximum(x.astype(jnp.float32), eps)
    pooled = jnp.mean(xc ** p[0], axis=(-2, -1), keepdims=True)
    return (pooled ** (1.0 / p[0])).astype(x.dtype)


def _check(out, ref, name):
    assert out.shape == ref.shape, (name, out.shape, ref.shape)
    err = jnp.max(jnp.abs(out.astype(jnp.float32) - ref.astype(jnp.float32)))
    assert jnp.allclose(out, ref, rtol=1e-3, atol=1e-5), f"{name}: max err {err}"


if __name__ == "__main__":
    keys = jax.random.split(jax.random.PRNGKey(0), 6)
    eps = 1e-6
    # GeM.__init__ default: p = ones(1) * 3.
    p3 = jnp.ones((1,), dtype=jnp.float32) * 3.0

    # 1) Small aligned feature map -> single chunk, integer-p specialization.
    x1 = jax.random.normal(keys[0], (2, 4, 16, 16), dtype=jnp.float32)
    _check(jax.block_until_ready(gem_pallas(x1, p3, eps)),
           gem_reference(x1, p3, eps), "case1")

    # 2) Mid-size map (hw=2304) -> single full-extent chunk, full-extent rows.
    x2 = jax.random.normal(keys[1], (3, 5, 48, 48), dtype=jnp.float32)
    _check(jax.block_until_ready(gem_pallas(x2, p3, eps)),
           gem_reference(x2, p3, eps), "case2")

    # 3) Classic 7x7 CNN head (hw=49, unaligned lanes) -> two balanced row blocks.
    x3 = jax.random.normal(keys[2], (2, 8, 7, 7), dtype=jnp.float32)
    _check(jax.block_until_ready(gem_pallas(x3, p3, eps)),
           gem_reference(x3, p3, eps), "case3")

    # 4) Huge feature map -> chunked spatial reduction (divisor chunk, no mask).
    x4 = jax.random.normal(keys[3], (1, 8, 384, 384), dtype=jnp.float32)
    _check(jax.block_until_ready(gem_pallas(x4, p3, eps)),
           gem_reference(x4, p3, eps), "case4")

    # 5) Traced (learnable) non-integer p under jit -> SMEM-p single-chunk path.
    p25 = jnp.ones((1,), dtype=jnp.float32) * 2.5
    gem_jit = jax.jit(gem_pallas)
    x5 = jax.random.normal(keys[4], (2, 3, 16, 16), dtype=jnp.float32)
    _check(jax.block_until_ready(gem_jit(x5, p25)),
           gem_reference(x5, p25, eps), "case5")

    # 6) Traced p + chunked reduction with a masked ragged final chunk.
    x6 = jax.random.normal(keys[5], (1, 8, 360, 367), dtype=jnp.float32)
    _check(jax.block_until_ready(gem_jit(x6, p25)),
           gem_reference(x6, p25, eps), "case6")

    print("KERNEL_OK")
</pallas_src>

<mosaic_0001>
module attributes {stable_mosaic.version = 11 : i64} {
  func.func @kernel(%arg0: i32, %arg1: memref<8x256xf32, #tpu.memory_space<vmem>>, %arg2: memref<8x1xf32, #tpu.memory_space<vmem>>) attributes {dimension_semantics = [#tpu.dimension_semantics<parallel>], iteration_bounds = array<i64: 1>, scalar_prefetch = 0 : i64, scratch_operands = 0 : i64, tpu.core_type = #tpu.core_type<tc>, window_params = [{transform_indices = @transform_0, window_bounds = array<i64: 8, 256>}, {transform_indices = @transform_1, window_bounds = array<i64: 8, 1>}]} {
    %c0 = arith.constant 0 : index
    %c0_0 = arith.constant 0 : index
    %0 = vector.load %arg1[%c0, %c0_0] : memref<8x256xf32, #tpu.memory_space<vmem>>, vector<8x256xf32>
    %cst = arith.constant 9.99999997E-7 : f32
    %1 = vector.broadcast %cst : f32 to vector<8x256xf32>
    %2 = arith.maximumf %0, %1 : vector<8x256xf32>
    %3 = arith.mulf %2, %2 : vector<8x256xf32>
    %4 = arith.mulf %2, %3 : vector<8x256xf32>
    %cst_1 = arith.constant dense<0.000000e+00> : vector<8xf32>
    %5 = vector.multi_reduction <add>, %4, %cst_1 [1] : vector<8x256xf32> to vector<8xf32>
    %6 = vector.shape_cast %5 : vector<8xf32> to vector<8x1xf32>
    %7 = math.log %6 : vector<8x1xf32>
    %cst_2 = arith.constant 5.54517746 : f32
    %8 = vector.broadcast %cst_2 : f32 to vector<8x1xf32>
    %9 = arith.subf %7, %8 : vector<8x1xf32>
    %cst_3 = arith.constant 0.333333343 : f32
    %10 = vector.broadcast %cst_3 : f32 to vector<8x1xf32>
    %11 = arith.mulf %9, %10 : vector<8x1xf32>
    %12 = math.exp %11 : vector<8x1xf32>
    %c0_4 = arith.constant 0 : index
    %c0_5 = arith.constant 0 : index
    %13 = vector.load %arg2[%c0_4, %c0_5] : memref<8x1xf32, #tpu.memory_space<vmem>>, vector<8x1xf32>
    tpu.vector_store %arg2[%c0_4, %c0_5], %12 {strides = array<i32>} : memref<8x1xf32, #tpu.memory_space<vmem>>, vector<8x1xf32>,
    return
  }
  func.func @transform_0(%arg0: i32) -> (i32, i32) {
    %c0_i32 = arith.constant 0 : i32
    %c0_i32_0 = arith.constant 0 : i32
    return %arg0, %c0_i32 : i32, i32
  }
  func.func @transform_1(%arg0: i32) -> (i32, i32) {
    %c0_i32 = arith.constant 0 : i32
    %c0_i32_0 = arith.constant 0 : i32
    return %arg0, %c0_i32 : i32, i32
  }
}

</mosaic_0001>

<llo_original>
// kernel: tpu_custom_call.1
$region0: #{tpu_custom_call.1}
  #allocation0 [shape = 'u32[]', space=smem, size = 0x4, offset = 0x4, fixed_abs, tag = 'smem constant byte address 0x4 - core index']
  #allocation1 [shape = 'u32[144,128]{1,0:T(1,128)}', space=vmem, size = 0x12000, scoped, tag = 'internal scratch']
  %s0 = inlined_call_operand.hbm [shape: f32[8,256], index: 0, kind: input, shape index: {}]
  %s1 = inlined_call_operand.vmem [shape: f32[8,1], index: 1, kind: output, shape index: {}]
  %s2 = sld [smem:[#allocation0]]
  $region18: #{tpu_custom_call.1} parent=0
    _
  %s4 = ssub.s32 1, %s2
  %s5 = scalar_select 0, %s4, %s2
  $region1: #{tpu_custom_call.1} parent=0
    #allocation2 [shape = 'u8[8192]{0}', space=vmem, size = 0x2000, scoped, tag = 'input window, operand 0, single buffered']
    #allocation3 [shape = 's32[1]{0}', space=sflag, size = 0x4, scoped, tag = 'scoped memory for tpu_custom_call.1']
    %6 = vsyncpa [#allocation3], 0
    // Predicated region
    $region2: #{tpu_custom_call.1} parent=1 // pred_check
      _
    $region3: #{tpu_custom_call.1} parent=1 // pred_check_branch
      %8 = sbr.rel (0) target = $region5
    $region4: #{tpu_custom_call.1} parent=1 // pred_region
      %s10 = ssub.s32 256, 256
      %11 = vsyncadd [#allocation3], %s10
      %s13 = sshll.u32 [#allocation2], 4
      %s14 = int_to_ptr.vmem [resolvable:$true] %s13
      %16 = dma.hbm_to_vmem [thread:$0]  %s0, 256, %s14, [#allocation3]
    $region5: #{tpu_custom_call.1} parent=1 // pred_fallthru
      _
    // Predicated region
    $region6: #{tpu_custom_call.1} parent=1 // pred_check
      _
    $region7: #{tpu_custom_call.1} parent=1 // pred_check_branch
      %18 = sbr.rel (0) target = $region9
    $region8: #{tpu_custom_call.1} parent=1 // pred_region
      %19 = dma.done [#allocation3], 256
    $region9: #{tpu_custom_call.1} parent=1 // pred_fallthru
      _
    %v20 = vld [vmem:[#allocation2] sm:$0xff]
    %v21 = vld [vmem:[#allocation2 + $0x8] sm:$0xff]
    %v22 = vmax.f32 %v20, 1e-06
    %v23 = vmax.f32 %v21, 1e-06
    %v24 = vmul.f32 %v22, %v22
    %v25 = vmul.f32 %v23, %v23
    %v26 = vmul.f32 %v22, %v24
    %v27 = vmul.f32 %v23, %v25
    %v28 = vadd.f32 %v26, %v27
    %29 = vadd.xlane.f32.xlu0 %v28
    %v30 = vpop.xlane.xlu0 %29
    %v31 = vlog2.pop %v30
    %v32 = vmul.f32 %v31, 0.6931472
    %v33 = vsub.f32 %v32, 5.5451775
    %v34 = vmul.f32 %v33, 0.33333334
    %v35 = vmul.f32 %v34, 1.442695
    %v36 = vpow.pop %v35
    %vm37 = vcmask 7168
    %38 = vst.msk [vmem:[%s1] sm:$0xff] %vm37, %v36
    // Predicated region
    $region10: #{tpu_custom_call.1} parent=1 // pred_check
      _
    $region11: #{tpu_custom_call.1} parent=1 // pred_check_branch
      %40 = sbr.rel (0) target = $region13
    $region12: #{tpu_custom_call.1} parent=1 // pred_region
      _
    $region13: #{tpu_custom_call.1} parent=1 // pred_fallthru
      _
    // Predicated region
    $region14: #{tpu_custom_call.1} parent=1 // pred_check
      _
    $region15: #{tpu_custom_call.1} parent=1 // pred_check_branch
      %42 = sbr.rel (0) target = $region17
    $region16: #{tpu_custom_call.1} parent=1 // pred_region
      _
    $region17: #{tpu_custom_call.1} parent=1 // pred_fallthru
      _
    %43 = vsyncpa [#allocation3], 1

</llo_original>
